<compile_context>
chip_gen: v7x
topology: tpu7x:2x2x1
jax: 0.10.0
libtpu: 0.0.40
codegen_flags: <defaults>
</compile_context>

<pallas_src>
import functools

import jax
import jax.numpy as jnp
from jax.experimental import pallas as pl
from jax.experimental.pallas import tpu as pltpu


# ----------------------------------------------------------------------------
# Pallas kernel: fused interleaved RoPE rotation (hot path)
# ----------------------------------------------------------------------------
def _rope_kernel(x_ref, cs_ref, o_ref):
    # x_ref : (Bt, tR, W)  native dtype of x
    # cs_ref: (2, tR, W)   plane 0 = cos (pair-repeated)
    #                      plane 1 = sin with sign baked in: -sin on even lanes,
    #                                +sin on odd lanes
    # o_ref : (Bt, tR, W)  native dtype of x
    x = x_ref[...].astype(jnp.float32)
    w = x.shape[-1]
    last = x.ndim - 1

    # Lane rotations (XLU slot, idle in this mem-bound kernel). Positive shifts.
    if w % 128 == 0:
        x_next = pltpu.roll(x, shift=w - 1, axis=last)   # x_next[j] = x[j + 1]
        x_prev = pltpu.roll(x, shift=1, axis=last)       # x_prev[j] = x[j - 1]
    else:
        # Non-lane-aligned fallback path (still correct, just masked stores).
        x_next = jnp.roll(x, shift=w - 1, axis=last)
        x_prev = jnp.roll(x, shift=1, axis=last)

    # Even lanes take x[j+1], odd lanes take x[j-1].  The parity select also
    # kills the roll wrap-around lanes and any cross-token lanes introduced by
    # folding several tokens into one row (token width d_k is even).
    lane = jax.lax.broadcasted_iota(jnp.int32, (x.shape[-2], x.shape[-1]), 1)
    rotated = jnp.where((lane & 1) == 0, x_next, x_prev)

    cos = cs_ref[0].astype(jnp.float32)   # (tR, W), broadcasts over Bt
    sin = cs_ref[1].astype(jnp.float32)   # sign-baked
    o_ref[...] = (x * cos + rotated * sin).astype(o_ref.dtype)


# ----------------------------------------------------------------------------
# Tiling helpers
# ----------------------------------------------------------------------------
def _choose_fold(seq_len: int, d_k: int) -> int:
    """Fold k consecutive tokens into one row so the row width k*d_k is a
    multiple of 128 lanes (unmasked vector stores). k must divide seq_len."""
    if d_k % 128 == 0:
        return 1
    k = 1
    while k <= seq_len and k * d_k <= 1024:
        if seq_len % k == 0 and (k * d_k) % 128 == 0:
            return k
        k += 1
    # TODO(synk): pad d_k up to a lane multiple instead of accepting masked stores.
    return 1


@functools.lru_cache(maxsize=None)
def _vmem_budget_bytes() -> int:
    """Per-generation VMEM budget (v7x: 64 MiB physical -> ~48 MiB usable;
    v5e/v6e: 128 MiB -> capped at 96 MiB), with headroom for compiler scratch."""
    phys = 64 << 20  # conservative default (v7x per-TC VMEM)
    try:
        info = pltpu.get_tpu_info()
        phys = int(getattr(info, "vmem_capacity_bytes", phys) or phys)
    except Exception:
        pass
    return min((phys * 3) // 4, 96 << 20)


def _choose_tiles(B: int, R: int, W: int, bpe_x: int, bpe_cs: int, budget: int):
    """Pick (row_tile, batch_tile).  Blocks: x/out (Bt, rt, W), cs (2, rt, W)."""
    target_x = 4 << 20   # ~4 MiB of x per block amortizes the ~0.35 us/step cost

    def total_bytes(rt, bt):
        # x in + out (double-buffered) + 2-plane cs table (double-buffered).
        return 4 * bt * rt * W * bpe_x + 4 * rt * W * bpe_cs

    if R <= 8:
        row_tile = R                                   # full dim -> always legal
    else:
        rows_target = max(8, target_x // (W * bpe_x))
        rows_budget = max(8, budget // (4 * W * (bpe_x + bpe_cs)))
        cap = min(R, rows_target, rows_budget)
        cap = max(8, (cap // 8) * 8)
        row_tile = None
        t = cap
        while t >= 8:                                  # prefer a dividing tile
            if R % t == 0:
                row_tile = t
                break
            t -= 8
        if row_tile is None or row_tile * 4 < cap:
            # No reasonable divisor: use a non-dividing tile with a cdiv grid
            # (masked edge block) instead of blowing up to the full R.
            row_tile = cap

    # Fold batch slices into the block while the per-step x DMA is still small.
    bt = 1
    while (bt < B
           and bt * row_tile * W * bpe_x < target_x
           and total_bytes(row_tile, bt + 1) <= budget):
        bt += 1
    return row_tile, bt


# ----------------------------------------------------------------------------
# pallas_call wrapper
# ----------------------------------------------------------------------------
@functools.partial(
    jax.jit, static_argnames=("fold", "row_tile", "batch_tile", "vmem_limit"))
def _rope_forward(x3, cs, *, fold, row_tile, batch_tile, vmem_limit):
    B, S, d_k = x3.shape
    W = fold * d_k
    R = S // fold
    xf = x3.reshape(B, R, W)        # free, contiguous reshape
    csf = cs.reshape(2, R, W)

    grid = (pl.cdiv(R, row_tile), pl.cdiv(B, batch_tile))
    x_spec = pl.BlockSpec((batch_tile, row_tile, W), lambda r, b: (b, r, 0))
    cs_spec = pl.BlockSpec((2, row_tile, W), lambda r, b: (0, r, 0))

    out = pl.pallas_call(
        _rope_kernel,
        out_shape=jax.ShapeDtypeStruct((B, R, W), x3.dtype),
        grid_spec=pltpu.PrefetchScalarGridSpec(
            num_scalar_prefetch=0,
            grid=grid,                      # batch innermost: cs block stays resident
            in_specs=[x_spec, cs_spec],
            out_specs=x_spec,
        ),
        compiler_params=pltpu.CompilerParams(
            dimension_semantics=("parallel", "parallel"),
            vmem_limit_bytes=int(vmem_limit),
        ),
    )(xf, csf)
    return out.reshape(B, S, d_k)


# ----------------------------------------------------------------------------
# Module-equivalent wrapper
# ----------------------------------------------------------------------------
class RoPE:
    def __init__(self, theta: float, d_k: int, max_seq_len: int):
        assert d_k % 2 == 0
        self.d_k = d_k
        self.max_seq_len = max_seq_len

        # Deterministic "parameter" setup (matches torch __init__).
        freqs = 1.0 / (theta ** (jnp.arange(0, d_k, 2, dtype=jnp.float32) / d_k))
        positions = jnp.arange(max_seq_len, dtype=jnp.float32)
        angle = jnp.outer(positions, freqs)            # (max_seq_len, d_k // 2)
        self.cos = jnp.cos(angle)                      # half tables (reference)
        self.sin = jnp.sin(angle)

        # 2-plane full-width table: [cos_pair_repeated, sign_baked_sin].
        cos_f = jnp.repeat(self.cos, 2, axis=-1)       # [c0, c0, c1, c1, ...]
        sin_f = jnp.repeat(self.sin, 2, axis=-1)
        lane_is_even = (jnp.arange(d_k) % 2) == 0
        sin_signed = jnp.where(lane_is_even, -sin_f, sin_f)
        self.cs_f32 = jnp.stack([cos_f, sin_signed], axis=0).astype(jnp.float32)
        self.cs_bf16 = self.cs_f32.astype(jnp.bfloat16)

    def __call__(self, x: jnp.ndarray, token_positions=None) -> jnp.ndarray:
        *lead, seq_len, d_k = x.shape
        assert d_k == self.d_k

        # Table in x's dtype on the bf16 path (halves table DMA bytes);
        # keep f32 tables for the f32 path so 1e-5 tolerance holds.
        table = self.cs_bf16 if x.dtype == jnp.bfloat16 else self.cs_f32

        if token_positions is None:
            cs = jax.lax.slice_in_dim(table, 0, seq_len, axis=1)   # plain slice
        else:
            token_positions = jnp.asarray(token_positions)
            if token_positions.ndim != 1:
                # TODO(synk): batched (multi-dim) token_positions not supported in the kernel path.
                raise NotImplementedError("only 1-D token_positions (or None) supported")
            cs = table[:, token_positions, :]                      # (2, seq, d_k)

        B = 1
        for s in lead:
            B *= s
        x3 = x.reshape(B, seq_len, d_k)

        fold = _choose_fold(seq_len, d_k)
        W = fold * d_k
        R = seq_len // fold
        bpe_x = jnp.dtype(x.dtype).itemsize
        bpe_cs = jnp.dtype(table.dtype).itemsize
        budget = _vmem_budget_bytes()
        row_tile, batch_tile = _choose_tiles(B, R, W, bpe_x, bpe_cs, budget)

        out = _rope_forward(x3, cs, fold=fold, row_tile=row_tile,
                            batch_tile=batch_tile, vmem_limit=budget)
        return out.reshape(*lead, seq_len, d_k)


# ----------------------------------------------------------------------------
# Pure-JAX reference (mirrors the PyTorch forward) for verification
# ----------------------------------------------------------------------------
def rope_reference(x, cos_table, sin_table, token_positions=None):
    seq_len = x.shape[-2]
    if token_positions is None:
        token_positions = jnp.arange(seq_len)
    cos = cos_table[token_positions]
    sin = sin_table[token_positions]
    x1, x2 = x[..., 0::2], x[..., 1::2]
    r0 = x1 * cos - x2 * sin
    r1 = x1 * sin + x2 * cos
    out = jnp.stack([r0, r1], axis=-1)
    return out.reshape(*x.shape)


if __name__ == "__main__":
    theta = 10000.0
    d_k = 32
    max_seq_len = 64
    batch, seq = 2, 8

    key = jax.random.PRNGKey(0)
    x = jax.random.normal(key, (batch, seq, d_k), dtype=jnp.float32)

    rope = RoPE(theta=theta, d_k=d_k, max_seq_len=max_seq_len)

    # f32 path
    out = jax.block_until_ready(rope(x))
    ref = rope_reference(x, rope.cos, rope.sin)
    assert out.shape == x.shape
    assert jnp.allclose(out, ref, atol=1e-5, rtol=1e-5), "f32 mismatch vs reference"

    # bf16 I/O path (native-dtype DMA, bf16 tables, f32 compute in-register)
    x_bf16 = x.astype(jnp.bfloat16)
    out_bf16 = jax.block_until_ready(rope(x_bf16))
    ref_bf16 = rope_reference(x_bf16.astype(jnp.float32), rope.cos, rope.sin)
    assert out_bf16.dtype == jnp.bfloat16
    assert jnp.allclose(out_bf16.astype(jnp.float32), ref_bf16, atol=3e-2, rtol=3e-2), \
        "bf16 mismatch vs reference"

    # explicit token_positions path
    pos = jnp.arange(seq, dtype=jnp.int32)
    out_pos = jax.block_until_ready(rope(x, pos))
    assert jnp.allclose(out_pos, ref, atol=1e-5, rtol=1e-5), "token_positions mismatch"

    print("KERNEL_OK")
</pallas_src>

<mosaic_0001>
module attributes {stable_mosaic.version = 11 : i64} {
  func.func @_rope_kernel(%arg0: i32, %arg1: i32, %arg2: memref<2x2x128xf32, #tpu.memory_space<vmem>>, %arg3: memref<2x2x128xf32, #tpu.memory_space<vmem>>, %arg4: memref<2x2x128xf32, #tpu.memory_space<vmem>>) attributes {dimension_semantics = [#tpu.dimension_semantics<parallel>, #tpu.dimension_semantics<parallel>], iteration_bounds = array<i64: 1, 1>, scalar_prefetch = 0 : i64, scratch_operands = 0 : i64, tpu.core_type = #tpu.core_type<tc>, window_params = [{transform_indices = @transform_0, window_bounds = array<i64: 2, 2, 128>}, {transform_indices = @transform_1, window_bounds = array<i64: 2, 2, 128>}, {transform_indices = @transform_2, window_bounds = array<i64: 2, 2, 128>}]} {
    %c0 = arith.constant 0 : index
    %c0_0 = arith.constant 0 : index
    %c0_1 = arith.constant 0 : index
    %0 = vector.load %arg2[%c0, %c0_0, %c0_1] : memref<2x2x128xf32, #tpu.memory_space<vmem>>, vector<2x2x128xf32>
    %c127_i32 = arith.constant 127 : i32
    %1 = tpu.dynamic_rotate %0 by %c127_i32 dim 2 : vector<2x2x128xf32>, i32 -> vector<2x2x128xf32>
    %c1_i32 = arith.constant 1 : i32
    %2 = tpu.dynamic_rotate %0 by %c1_i32 dim 2 : vector<2x2x128xf32>, i32 -> vector<2x2x128xf32>
    %3 = tpu.iota {dimensions = array<i32: 1>} : vector<2x128xi32>
    %c1_i32_2 = arith.constant 1 : i32
    %4 = vector.broadcast %c1_i32_2 : i32 to vector<2x128xi32>
    %5 = arith.andi %3, %4 : vector<2x128xi32>
    %c0_i32 = arith.constant 0 : i32
    %6 = vector.broadcast %c0_i32 : i32 to vector<2x128xi32>
    %7 = arith.cmpi eq, %5, %6 : vector<2x128xi32>
    %8 = vector.shape_cast %7 : vector<2x128xi1> to vector<1x2x128xi1>
    %9 = vector.broadcast %8 : vector<1x2x128xi1> to vector<2x2x128xi1>
    %10 = arith.select %9, %1, %2 : vector<2x2x128xi1>, vector<2x2x128xf32>
    %c0_3 = arith.constant 0 : index
    %c0_4 = arith.constant 0 : index
    %c0_5 = arith.constant 0 : index
    %11 = vector.load %arg3[%c0_3, %c0_4, %c0_5] : memref<2x2x128xf32, #tpu.memory_space<vmem>>, vector<1x2x128xf32>
    %12 = vector.shape_cast %11 : vector<1x2x128xf32> to vector<2x128xf32>
    %c1 = arith.constant 1 : index
    %c0_6 = arith.constant 0 : index
    %c0_7 = arith.constant 0 : index
    %13 = vector.load %arg3[%c1, %c0_6, %c0_7] : memref<2x2x128xf32, #tpu.memory_space<vmem>>, vector<1x2x128xf32>
    %14 = vector.shape_cast %13 : vector<1x2x128xf32> to vector<2x128xf32>
    %15 = vector.shape_cast %12 : vector<2x128xf32> to vector<1x2x128xf32>
    %16 = vector.broadcast %15 : vector<1x2x128xf32> to vector<2x2x128xf32>
    %17 = arith.mulf %0, %16 : vector<2x2x128xf32>
    %18 = vector.shape_cast %14 : vector<2x128xf32> to vector<1x2x128xf32>
    %19 = vector.broadcast %18 : vector<1x2x128xf32> to vector<2x2x128xf32>
    %20 = arith.mulf %10, %19 : vector<2x2x128xf32>
    %21 = arith.addf %17, %20 : vector<2x2x128xf32>
    %c0_8 = arith.constant 0 : index
    %c0_9 = arith.constant 0 : index
    %c0_10 = arith.constant 0 : index
    %22 = vector.load %arg4[%c0_8, %c0_9, %c0_10] : memref<2x2x128xf32, #tpu.memory_space<vmem>>, vector<2x2x128xf32>
    tpu.vector_store %arg4[%c0_8, %c0_9, %c0_10], %21 {strides = array<i32>} : memref<2x2x128xf32, #tpu.memory_space<vmem>>, vector<2x2x128xf32>,
    return
  }
  func.func @transform_0(%arg0: i32, %arg1: i32) -> (i32, i32, i32) {
    %c0_i32 = arith.constant 0 : i32
    %c0_i32_0 = arith.constant 0 : i32
    return %arg1, %arg0, %c0_i32 : i32, i32, i32
  }
  func.func @transform_1(%arg0: i32, %arg1: i32) -> (i32, i32, i32) {
    %c0_i32 = arith.constant 0 : i32
    %c0_i32_0 = arith.constant 0 : i32
    %c0_i32_1 = arith.constant 0 : i32
    return %c0_i32, %arg0, %c0_i32_0 : i32, i32, i32
  }
  func.func @transform_2(%arg0: i32, %arg1: i32) -> (i32, i32, i32) {
    %c0_i32 = arith.constant 0 : i32
    %c0_i32_0 = arith.constant 0 : i32
    return %arg1, %arg0, %c0_i32 : i32, i32, i32
  }
}

</mosaic_0001>

<llo_original>
// kernel: _rope_forward.1
$region0: #{_rope_forward.1}
  #allocation0 [shape = 'u32[]', space=smem, size = 0x4, offset = 0x4, fixed_abs, tag = 'smem constant byte address 0x4 - core index']
  #allocation1 [shape = 'u32[144,128]{1,0:T(1,128)}', space=vmem, size = 0x12000, scoped, tag = 'internal scratch']
  %s0 = inlined_call_operand.vmem [shape: f32[2,2,128], index: 0, kind: input, shape index: {}]
  %s1 = inlined_call_operand.vmem [shape: f32[2,2,128], index: 1, kind: input, shape index: {}]
  %s2 = inlined_call_operand.vmem [shape: f32[2,2,128], index: 2, kind: output, shape index: {}]
  %s3 = sld [smem:[#allocation0]]
  $region18: #{_rope_forward.1} parent=0
    _
  %s5 = ssub.s32 1, %s3
  %s6 = scalar_select 0, %s5, %s3
  // Predicated region
  $region2: #{_rope_forward.1} parent=0 // pred_check
    _
  $region3: #{_rope_forward.1} parent=0 // pred_check_branch
    %8 = sbr.rel (0) target = $region5
  $region4: #{_rope_forward.1} parent=0 // pred_region
    _
  $region5: #{_rope_forward.1} parent=0 // pred_fallthru
    _
  // Predicated region
  $region6: #{_rope_forward.1} parent=0 // pred_check
    _
  $region7: #{_rope_forward.1} parent=0 // pred_check_branch
    %10 = sbr.rel (0) target = $region9
  $region8: #{_rope_forward.1} parent=0 // pred_region
    _
  $region9: #{_rope_forward.1} parent=0 // pred_fallthru
    _
  %v11 = vld [vmem:[%s0] sm:$0x3]
  %v12 = vld [vmem:[%s0 + $0x2] sm:$0x3]
  %13 = vrot.lane.b32.xlu0 %v11, 127
  %v14 = vpop.permute.xlu0 %13
  %15 = vrot.lane.b32.xlu0 %v12, 127
  %v16 = vpop.permute.xlu0 %15
  %17 = vrot.lane.b32.xlu0 %v11, 1
  %v18 = vpop.permute.xlu0 %17
  %19 = vrot.lane.b32.xlu0 %v12, 1
  %v20 = vpop.permute.xlu0 %19
  %v21 = vlaneseq
  %v22 = vand.u32 %v21, 127
  %v23 = vand.u32 %v22, 1
  %vm24 = vcmp.eq.s32.totalorder %v23, 0
  %v25 = vsel %vm24, 1, 0
  %vm26 = vcmp.eq.s32.totalorder %v25, 1
  %v27 = vsel %vm26, %v14, %v18
  %v28 = vsel %vm26, %v16, %v20
  %v29 = vld [vmem:[%s1] sm:$0x3]
  %s30 = scalar_lea.vmem %s1, 2
  %v31 = vld [vmem:[%s30] sm:$0x3]
  %v32 = vmul.f32 %v11, %v29
  %v33 = vmul.f32 %v12, %v29
  %v34 = vmul.f32 %v27, %v31
  %v35 = vmul.f32 %v28, %v31
  %v36 = vadd.f32 %v32, %v34
  %v37 = vadd.f32 %v33, %v35
  %38 = vst [vmem:[%s2] sm:$0x3] %v36
  %39 = vst [vmem:[%s2 + $0x2] sm:$0x3] %v37
  // Predicated region
  $region10: #{_rope_forward.1} parent=0 // pred_check
    _
  $region11: #{_rope_forward.1} parent=0 // pred_check_branch
    %41 = sbr.rel (0) target = $region13
  $region12: #{_rope_forward.1} parent=0 // pred_region
    _
  $region13: #{_rope_forward.1} parent=0 // pred_fallthru
    _
  // Predicated region
  $region14: #{_rope_forward.1} parent=0 // pred_check
    _
  $region15: #{_rope_forward.1} parent=0 // pred_check_branch
    %43 = sbr.rel (0) target = $region17
  $region16: #{_rope_forward.1} parent=0 // pred_region
    _
  $region17: #{_rope_forward.1} parent=0 // pred_fallthru
    _

</llo_original>
